<compile_context>
chip_gen: v7x
topology: tpu7x:2x2x1
jax: 0.10.0
libtpu: 0.0.40
codegen_flags: <defaults>
</compile_context>

<pallas_src>
import jax
import jax.numpy as jnp
from jax.experimental import pallas as pl
from jax.experimental.pallas import tpu as pltpu


def _round_up(v, m):
    return -(-v // m) * m


def _vmem_capacity_bytes():
    """Physical VMEM capacity of the local TPU; conservative fallback."""
    try:
        info = pltpu.get_tpu_info()
    except Exception:
        return 64 * 1024 * 1024              # conservative (v7x-sized) fallback
    for name in ("vmem_capacity_bytes", "vmem_size_bytes", "vmem_bytes"):
        val = getattr(info, name, None)
        if val:
            return int(val)
    return 64 * 1024 * 1024


def _plan_blocks(B, T, N, F, block_b):
    """Generation-aware batch-block and VMEM-limit sizing.

    The budget counts padded VMEM footprints of the x block, the output block
    and the live in-kernel temporaries (lhs1/lhs/rhs + ~5 attention planes),
    not just the raw I/O blocks, so v7x's 64 MiB physical VMEM and v5e's
    16 MiB scoped default are both respected.
    """
    mib = 1024 * 1024
    vmem_cap = _vmem_capacity_bytes()
    two_core = vmem_cap <= 80 * mib          # v7x-class chip: 64 MiB VMEM, 2 TCs

    n_sub = _round_up(N, 8)
    n_lane = _round_up(N, 128)
    f_lane = _round_up(F, 128)
    t_lane = _round_up(T, 128)
    t_sub = _round_up(T, 8)

    x_blk = T * n_sub * f_lane * 4                      # one batch elem, f32, padded
    plane = n_sub * n_lane * 4                          # one (N, N) attention plane
    tmps = (n_sub * f_lane + n_sub * t_lane + t_sub * n_lane) * 4   # lhs1, lhs, rhs
    per_b = 2 * x_blk + 2 * plane + 5 * plane + tmps    # 2x = double-buffered blocks
    resident = 4 * plane + 64 * 1024                    # b_s + v_s^T (+ weights)

    vmem_limit = min((48 if two_core else 100) * mib, vmem_cap - 8 * mib)
    vmem_limit = max(vmem_limit, 32 * mib)

    if block_b is None:
        budget = vmem_limit - resident - 4 * mib
        max_bb = max(1, budget // per_b)
        # v5e/v6e have a single TensorCore: the grid is a serial loop, so just
        # maximize the batch block (amortizes ~0.35us per grid step).  On a
        # v7x-class megacore keep >= 4 steps (>= 2 per core) so both cores get
        # work and per-core DMA/compute overlap survives.
        target_steps = min(B, 4) if two_core else 1
        block_b = int(max(1, min(max_bb, -(-B // max(1, target_steps)))))
        # Prefer a divisor of B: avoids zero-padding x along batch (extra HBM pass).
        while B % block_b:
            block_b -= 1
    return int(block_b), int(vmem_limit)


def _spatial_attention_kernel(x_ref, w1_ref, w2_ref, w3_ref, bs_ref, vst_ref,
                              out_ref):
    f32 = jnp.float32
    x = x_ref[...].astype(f32)               # (BB, T, N, F) native module layout
    w1 = w1_ref[...]                         # (T, 1)
    w2 = w2_ref[...]                         # (F, T)
    w3 = w3_ref[...]                         # (1, F)
    b_s = bs_ref[...]                        # (1, N, N)
    vst = vst_ref[...]                       # (N, N) == v_s^T (bf16 MXU feed by default)

    bb, t, n, f = x.shape

    # lhs1[b, n, f] = sum_t x[b, t, n, f] * W_1[t]     (leading-axis reduce, VPU)
    lhs1 = jnp.sum(x * w1[None, :, :, None], axis=1)                     # (BB, N, F)
    # lhs[b, n, t] = lhs1 @ W_2                         (canonical (N,F)x(F,T) feed)
    lhs = jnp.einsum('bnf,ft->bnt', lhs1, w2, preferred_element_type=f32)  # (BB, N, T)
    # rhs[b, t, n] = sum_f x[b, t, n, f] * W_3[f]       (lane reduce over F)
    rhs = jnp.sum(x * w3[None, None, :, :], axis=-1)                     # (BB, T, N)

    # product[b, i, j] = sum_t lhs[b, i, t] * rhs[b, t, j]
    # Rows (i) live on sublanes -> only ceil(N/8)*8 rows of plane work.
    product = jnp.einsum('bnt,btm->bnm', lhs, rhs,
                         preferred_element_type=f32)                     # (BB, N, N)
    p = jax.nn.sigmoid(product + b_s)                                    # (BB, N, N)

    # s[b, i, j] = sum_k p[b, i, k] * v_s[j, k] == p @ v_s^T.
    # Flatten batch into M: v_s^T is pushed into the MXU weight registers once
    # per grid step and M = BB*N keeps the 256-wide MXU full.  Feed the MXU in
    # vst's dtype (bf16 by default), accumulate in f32.
    if n % 8 == 0:
        # layout-preserving reshape (N is a multiple of the sublane tile)
        p2 = p.reshape(bb * n, n).astype(vst.dtype)
        s = jnp.dot(p2, vst, preferred_element_type=f32).reshape(bb, n, n)
    else:
        s = jnp.einsum('bik,kj->bij', p.astype(vst.dtype), vst,
                       preferred_element_type=f32)

    # Column softmax over dim=1 of the (B, N, N) tensor.
    # NOTE: max-subtraction guarantees denom >= 1, which is what makes the
    # approx reciprocal + single Newton step safe.
    s = s - jnp.max(s, axis=1, keepdims=True)
    e = jnp.exp(s)
    denom = jnp.sum(e, axis=1, keepdims=True)
    inv = pl.reciprocal(denom, approx=True)      # EUP seed ...
    inv = inv * (2.0 - denom * inv)              # ... + one Newton step (f32-exact)
    out_ref[...] = (e * inv).astype(out_ref.dtype)


def spatial_attention(x, w1, w2, w3, b_s, v_s, *, block_b=None,
                      mxu_dtype=jnp.bfloat16):
    """SpatialAttention forward.  x: (B, T, N, F) in the module's native layout."""
    B, T, N, F = x.shape
    f32 = jnp.float32

    block_b, vmem_limit = _plan_blocks(B, T, N, F, block_b)
    b_pad = _round_up(B, block_b)
    grid_b = b_pad // block_b

    # Only pad batch if an explicit, non-divisor block_b was requested.
    x_in = x if b_pad == B else jnp.pad(
        x, ((0, b_pad - B), (0, 0), (0, 0), (0, 0)))

    w1_f = w1.astype(f32)                        # (T, 1)
    w2_f = w2.astype(f32)                        # (F, T)
    w3_row = w3.astype(f32).reshape(1, F)        # (1, F): lane-broadcast in kernel
    b_s_f = b_s.astype(f32)                      # (1, N, N)
    vst = v_s.astype(f32).T.astype(mxu_dtype)    # (N, N) = v_s^T, pre-cast MXU feed

    itemsize = jnp.dtype(x.dtype).itemsize
    flops = (2 * B * (2 * T * N * F + N * F * T + N * N * T + N * N * N)
             + 8 * B * N * N)
    transcendentals = 2 * B * N * N + B * N
    bytes_accessed = (x_in.size * itemsize + b_pad * N * N * itemsize
                      + 4 * (w1.size + w2.size + w3.size + b_s.size)
                      + N * N * jnp.dtype(mxu_dtype).itemsize)

    out = pl.pallas_call(
        _spatial_attention_kernel,
        out_shape=jax.ShapeDtypeStruct((b_pad, N, N), x.dtype),
        grid=(grid_b,),
        in_specs=[
            # x in native layout; full T/N/F extents (no host-side relayout).
            # If profiling shows exposed x DMA at large F*N, raise its depth
            # with pipeline_mode=pl.Buffered(3).
            pl.BlockSpec((block_b, T, N, F), lambda b: (b, 0, 0, 0)),
            pl.BlockSpec((T, 1), lambda b: (0, 0)),          # W_1
            pl.BlockSpec((F, T), lambda b: (0, 0)),          # W_2
            pl.BlockSpec((1, F), lambda b: (0, 0)),          # W_3 (row layout)
            pl.BlockSpec((1, N, N), lambda b: (0, 0, 0)),    # b_s (resident)
            pl.BlockSpec((N, N), lambda b: (0, 0)),          # v_s^T (resident)
        ],
        out_specs=pl.BlockSpec((block_b, N, N), lambda b: (b, 0, 0)),
        compiler_params=pltpu.CompilerParams(
            dimension_semantics=("parallel",),
            vmem_limit_bytes=vmem_limit),
        cost_estimate=pl.CostEstimate(
            flops=flops,
            transcendentals=transcendentals,
            bytes_accessed=bytes_accessed),
    )(x_in, w1_f, w2_f, w3_row, b_s_f, vst)

    return out if b_pad == B else out[:B]


def spatial_attention_ref(x, w1, w2, w3, b_s, v_s):
    """Pure-JAX reference mirroring the PyTorch forward exactly."""
    lhs = jnp.einsum('btnf,t->bnf', x, w1[:, 0])
    lhs = jnp.einsum('bnf,ft->bnt', lhs, w2)
    rhs = jnp.einsum('f,btnf->btn', w3[:, 0], x)
    product = jnp.einsum('bnt,btm->bnm', lhs, rhs)
    p = jax.nn.sigmoid(product + b_s)            # b_s broadcasts (1,N,N)->(B,N,N)
    s = jnp.einsum('bik,jk->bij', p, v_s)
    s = s - jnp.max(s, axis=1, keepdims=True)
    e = jnp.exp(s)
    return e / jnp.sum(e, axis=1, keepdims=True)


def xavier_uniform(key, shape, gain=1.414):
    # torch.nn.init.xavier_uniform_ for 2D/3D tensors
    if len(shape) == 2:
        fan_out, fan_in = shape
    else:
        receptive = 1
        for d in shape[2:]:
            receptive *= d
        fan_out, fan_in = shape[0] * receptive, shape[1] * receptive
    bound = gain * (6.0 / (fan_in + fan_out)) ** 0.5
    return jax.random.uniform(key, shape, jnp.float32, minval=-bound, maxval=bound)


if __name__ == "__main__":
    B, T, N, F = 2, 8, 16, 4   # batch, num_of_timesteps, num_of_vertices, num_of_features

    key = jax.random.PRNGKey(0)
    kx, k1, k2, k3, kb, kv = jax.random.split(key, 6)

    x = jax.random.normal(kx, (B, T, N, F), jnp.float32)
    W_1 = xavier_uniform(k1, (T, 1))
    W_2 = xavier_uniform(k2, (F, T))
    W_3 = xavier_uniform(k3, (F, 1))
    b_s = xavier_uniform(kb, (1, N, N))
    v_s = xavier_uniform(kv, (N, N))

    ref = spatial_attention_ref(x, W_1, W_2, W_3, b_s, v_s)

    # Default path: bf16 MXU feed for the (N,N)x(N,N) contraction (f32 accumulate).
    out = spatial_attention(x, W_1, W_2, W_3, b_s, v_s)
    out = jax.block_until_ready(out)
    assert out.shape == (B, N, N)
    assert jnp.allclose(out, ref, atol=3e-2, rtol=3e-2), "bf16-feed mismatch vs reference"
    # softmax sanity: columns (dim=1) sum to 1 (normalization is exact in f32)
    assert jnp.allclose(jnp.sum(out, axis=1), 1.0, atol=1e-4)

    # Bit-accurate check with f32 MXU feeds.
    out_f32 = spatial_attention(x, W_1, W_2, W_3, b_s, v_s, mxu_dtype=jnp.float32)
    out_f32 = jax.block_until_ready(out_f32)
    assert jnp.allclose(out_f32, ref, atol=2e-5, rtol=2e-5), "f32-feed mismatch vs reference"

    print("KERNEL_OK")
</pallas_src>

<mosaic_0001>
module attributes {stable_mosaic.version = 11 : i64} {
  func.func @_spatial_attention_kernel(%arg0: i32, %arg1: memref<1x8x16x4xf32, #tpu.memory_space<vmem>>, %arg2: memref<8x1xf32, #tpu.memory_space<vmem>>, %arg3: memref<4x8xf32, #tpu.memory_space<vmem>>, %arg4: memref<1x4xf32, #tpu.memory_space<vmem>>, %arg5: memref<1x16x16xf32, #tpu.memory_space<vmem>>, %arg6: memref<16x16xbf16, #tpu.memory_space<vmem>>, %arg7: memref<1x16x16xf32, #tpu.memory_space<vmem>>) attributes {dimension_semantics = [#tpu.dimension_semantics<parallel>], iteration_bounds = array<i64: 2>, scalar_prefetch = 0 : i64, scratch_operands = 0 : i64, tpu.core_type = #tpu.core_type<tc>, window_params = [{transform_indices = @transform_0, window_bounds = array<i64: 1, 8, 16, 4>}, {pipeline_mode = #tpu.pipeline_mode<synchronous>, transform_indices = @transform_1, window_bounds = array<i64: 8, 1>}, {pipeline_mode = #tpu.pipeline_mode<synchronous>, transform_indices = @transform_2, window_bounds = array<i64: 4, 8>}, {pipeline_mode = #tpu.pipeline_mode<synchronous>, transform_indices = @transform_3, window_bounds = array<i64: 1, 4>}, {pipeline_mode = #tpu.pipeline_mode<synchronous>, transform_indices = @transform_4, window_bounds = array<i64: 1, 16, 16>}, {pipeline_mode = #tpu.pipeline_mode<synchronous>, transform_indices = @transform_5, window_bounds = array<i64: 16, 16>}, {transform_indices = @transform_6, window_bounds = array<i64: 1, 16, 16>}]} {
    %c0 = arith.constant 0 : index
    %c0_0 = arith.constant 0 : index
    %c0_1 = arith.constant 0 : index
    %c0_2 = arith.constant 0 : index
    %0 = vector.load %arg1[%c0, %c0_0, %c0_1, %c0_2] : memref<1x8x16x4xf32, #tpu.memory_space<vmem>>, vector<1x8x16x4xf32>
    %c0_3 = arith.constant 0 : index
    %c0_4 = arith.constant 0 : index
    %1 = vector.load %arg2[%c0_3, %c0_4] : memref<8x1xf32, #tpu.memory_space<vmem>>, vector<8x1xf32>
    %c0_5 = arith.constant 0 : index
    %c0_6 = arith.constant 0 : index
    %2 = vector.load %arg3[%c0_5, %c0_6] : memref<4x8xf32, #tpu.memory_space<vmem>>, vector<4x8xf32>
    %c0_7 = arith.constant 0 : index
    %c0_8 = arith.constant 0 : index
    %3 = vector.load %arg4[%c0_7, %c0_8] : memref<1x4xf32, #tpu.memory_space<vmem>>, vector<1x4xf32>
    %c0_9 = arith.constant 0 : index
    %c0_10 = arith.constant 0 : index
    %c0_11 = arith.constant 0 : index
    %4 = vector.load %arg5[%c0_9, %c0_10, %c0_11] : memref<1x16x16xf32, #tpu.memory_space<vmem>>, vector<1x16x16xf32>
    %c0_12 = arith.constant 0 : index
    %c0_13 = arith.constant 0 : index
    %5 = vector.load %arg6[%c0_12, %c0_13] : memref<16x16xbf16, #tpu.memory_space<vmem>>, vector<16x16xbf16>
    %6 = vector.shape_cast %1 : vector<8x1xf32> to vector<1x8x1x1xf32>
    %7 = vector.broadcast %6 : vector<1x8x1x1xf32> to vector<1x8x16x4xf32>
    %8 = arith.mulf %0, %7 : vector<1x8x16x4xf32>
    %cst = arith.constant dense<0.000000e+00> : vector<1x16x4xf32>
    %9 = vector.multi_reduction <add>, %8, %cst [1] : vector<1x8x16x4xf32> to vector<1x16x4xf32>
    "tpu.trace_start"() <{level = 10 : i32, message = "bnf,ft->bnt"}> : () -> ()
    %cst_14 = arith.constant dense<0.000000e+00> : vector<1x16x8xf32>
    %10 = tpu.matmul %9, %2, %cst_14 {dimension_numbers = #tpu.dot_dimension_numbers<[2], [0], [0, 1], [1], [0, 0, 0, 1, 1, 1], [], []>} : vector<1x16x4xf32>, vector<4x8xf32>, vector<1x16x8xf32> -> vector<1x16x8xf32>
    "tpu.trace_stop"() : () -> ()
    %11 = vector.shape_cast %3 : vector<1x4xf32> to vector<1x1x1x4xf32>
    %12 = vector.broadcast %11 : vector<1x1x1x4xf32> to vector<1x8x16x4xf32>
    %13 = arith.mulf %0, %12 : vector<1x8x16x4xf32>
    %cst_15 = arith.constant dense<0.000000e+00> : vector<1x8x16xf32>
    %14 = vector.multi_reduction <add>, %13, %cst_15 [3] : vector<1x8x16x4xf32> to vector<1x8x16xf32>
    "tpu.trace_start"() <{level = 10 : i32, message = "bnt,btm->bnm"}> : () -> ()
    %cst_16 = arith.constant dense<0.000000e+00> : vector<1x16x16xf32>
    %15 = tpu.matmul %10, %14, %cst_16 {dimension_numbers = #tpu.dot_dimension_numbers<[2], [1], [1], [2], [0, 0, 0, 1, 1, 2], [0], [0]>} : vector<1x16x8xf32>, vector<1x8x16xf32>, vector<1x16x16xf32> -> vector<1x16x16xf32>
    "tpu.trace_stop"() : () -> ()
    %16 = arith.addf %15, %4 : vector<1x16x16xf32>
    %17 = arith.negf %16 : vector<1x16x16xf32>
    %18 = math.exp %17 : vector<1x16x16xf32>
    %cst_17 = arith.constant 1.000000e+00 : f32
    %19 = vector.broadcast %cst_17 : f32 to vector<1x16x16xf32>
    %20 = arith.addf %19, %18 : vector<1x16x16xf32>
    %21 = arith.divf %19, %20 : vector<1x16x16xf32>
    %22 = vector.shape_cast %21 : vector<1x16x16xf32> to vector<16x16xf32>
    %23 = arith.truncf %22 : vector<16x16xf32> to vector<16x16xbf16>
    %cst_18 = arith.constant dense<0.000000e+00> : vector<16x16xf32>
    %24 = tpu.matmul %23, %5, %cst_18 {dimension_numbers = #tpu.dot_dimension_numbers<[1], [0], [0], [1], [0, 0, 1, 1], [], []>} : vector<16x16xbf16>, vector<16x16xbf16>, vector<16x16xf32> -> vector<16x16xf32>
    %25 = vector.shape_cast %24 : vector<16x16xf32> to vector<1x16x16xf32>
    %cst_19 = arith.constant dense<0xFF800000> : vector<1x16xf32>
    %26 = vector.multi_reduction <maximumf>, %25, %cst_19 [1] : vector<1x16x16xf32> to vector<1x16xf32>
    %27 = vector.shape_cast %26 : vector<1x16xf32> to vector<1x1x16xf32>
    %28 = vector.broadcast %27 : vector<1x1x16xf32> to vector<1x16x16xf32>
    %29 = arith.subf %25, %28 : vector<1x16x16xf32>
    %30 = math.exp %29 : vector<1x16x16xf32>
    %cst_20 = arith.constant dense<0.000000e+00> : vector<1x16xf32>
    %31 = vector.multi_reduction <add>, %30, %cst_20 [1] : vector<1x16x16xf32> to vector<1x16xf32>
    %32 = vector.shape_cast %31 : vector<1x16xf32> to vector<1x1x16xf32>
    %33 = tpu.reciprocal %32 {approx = true} : vector<1x1x16xf32> -> vector<1x1x16xf32>
    %34 = arith.mulf %32, %33 : vector<1x1x16xf32>
    %cst_21 = arith.constant 2.000000e+00 : f32
    %35 = vector.broadcast %cst_21 : f32 to vector<1x1x16xf32>
    %36 = arith.subf %35, %34 : vector<1x1x16xf32>
    %37 = arith.mulf %33, %36 : vector<1x1x16xf32>
    %38 = vector.broadcast %37 : vector<1x1x16xf32> to vector<1x16x16xf32>
    %39 = arith.mulf %30, %38 : vector<1x16x16xf32>
    %c0_22 = arith.constant 0 : index
    %c0_23 = arith.constant 0 : index
    %c0_24 = arith.constant 0 : index
    %40 = vector.load %arg7[%c0_22, %c0_23, %c0_24] : memref<1x16x16xf32, #tpu.memory_space<vmem>>, vector<1x16x16xf32>
    tpu.vector_store %arg7[%c0_22, %c0_23, %c0_24], %39 {strides = array<i32>} : memref<1x16x16xf32, #tpu.memory_space<vmem>>, vector<1x16x16xf32>,
    return
  }
  func.func @transform_0(%arg0: i32) -> (i32, i32, i32, i32) {
    %c0_i32 = arith.constant 0 : i32
    %c0_i32_0 = arith.constant 0 : i32
    %c0_i32_1 = arith.constant 0 : i32
    %c0_i32_2 = arith.constant 0 : i32
    return %arg0, %c0_i32, %c0_i32_0, %c0_i32_1 : i32, i32, i32, i32
  }
  func.func @transform_1(%arg0: i32) -> (i32, i32) {
    %c0_i32 = arith.constant 0 : i32
    %c0_i32_0 = arith.constant 0 : i32
    %c0_i32_1 = arith.constant 0 : i32
    return %c0_i32, %c0_i32_0 : i32, i32
  }
  func.func @transform_2(%arg0: i32) -> (i32, i32) {
    %c0_i32 = arith.constant 0 : i32
    %c0_i32_0 = arith.constant 0 : i32
    %c0_i32_1 = arith.constant 0 : i32
    return %c0_i32, %c0_i32_0 : i32, i32
  }
  func.func @transform_3(%arg0: i32) -> (i32, i32) {
    %c0_i32 = arith.constant 0 : i32
    %c0_i32_0 = arith.constant 0 : i32
    %c0_i32_1 = arith.constant 0 : i32
    return %c0_i32, %c0_i32_0 : i32, i32
  }
  func.func @transform_4(%arg0: i32) -> (i32, i32, i32) {
    %c0_i32 = arith.constant 0 : i32
    %c0_i32_0 = arith.constant 0 : i32
    %c0_i32_1 = arith.constant 0 : i32
    %c0_i32_2 = arith.constant 0 : i32
    return %c0_i32, %c0_i32_0, %c0_i32_1 : i32, i32, i32
  }
  func.func @transform_5(%arg0: i32) -> (i32, i32) {
    %c0_i32 = arith.constant 0 : i32
    %c0_i32_0 = arith.constant 0 : i32
    %c0_i32_1 = arith.constant 0 : i32
    return %c0_i32, %c0_i32_0 : i32, i32
  }
  func.func @transform_6(%arg0: i32) -> (i32, i32, i32) {
    %c0_i32 = arith.constant 0 : i32
    %c0_i32_0 = arith.constant 0 : i32
    %c0_i32_1 = arith.constant 0 : i32
    return %arg0, %c0_i32, %c0_i32_0 : i32, i32, i32
  }
}

</mosaic_0001>

<llo_original>
// kernel: tpu_custom_call.1
$region0: #{tpu_custom_call.1}
  #allocation0 [shape = 'u32[]', space=smem, size = 0x4, offset = 0x4, fixed_abs, tag = 'smem constant byte address 0x4 - core index']
  #allocation1 [shape = 'u32[144,128]{1,0:T(1,128)}', space=vmem, size = 0x12000, scoped, tag = 'internal scratch']
  %s0 = inlined_call_operand.vmem [shape: f32[2,8,16,4], index: 0, kind: input, shape index: {}]
  %s1 = inlined_call_operand.vmem [shape: f32[8,1], index: 1, kind: input, shape index: {}]
  %s2 = inlined_call_operand.vmem [shape: f32[4,8], index: 2, kind: input, shape index: {}]
  %s3 = inlined_call_operand.vmem [shape: f32[1,4], index: 3, kind: input, shape index: {}]
  %s4 = inlined_call_operand.vmem [shape: f32[1,16,16], index: 4, kind: input, shape index: {}]
  %s5 = inlined_call_operand.vmem [shape: bf16[16,16], index: 5, kind: input, shape index: {}]
  %s6 = inlined_call_operand.hbm [shape: f32[2,16,16], index: 6, kind: output, shape index: {}]
  %s7 = sld [smem:[#allocation0]]
  $region57: #{tpu_custom_call.1} parent=0
    _
  %s9 = ssub.s32 1, %s7
  %s10 = scalar_select 0, %s9, %s7
  $region1: #{tpu_custom_call.1} parent=0
    #allocation2 [shape = 'u8[16384]{0}', space=vmem, size = 0x4000, scoped, tag = 'output window, operand 0']
    #allocation3 [shape = 's32[2]{0}', space=sflag, size = 0x8, scoped, tag = 'scoped memory for tpu_custom_call.1']
    %11 = vsyncpa [#allocation3], 0
    %s12 = scalar_lea.sflag [#allocation3], 1
    %13 = vsyncpa %s12, 0
    loop: start=0, step=1, limit=4
    $region2: #{tpu_custom_call.1} parent=1 // loop_pre_header
      _
    $region3: #{tpu_custom_call.1} parent=1 // loop_header
      %s15 = sphi 0, %s19
      %p16 = scmp.ge.s32.totalorder %s15, 4
      %s25 = sphi 0, %s27
      %s28 = sphi 0, %s25
      %s29 = sphi 0, %s28
      %s45 = sphi 0, %s29
      %s49 = sphi 0, %s49
      %s51 = sphi 0, %s49
      %s52 = sphi 0, %s51
      %s66 = sphi 0, %s52
      %s70 = sphi 0, %s70
      %s72 = sphi 0, %s70
      %s73 = sphi 0, %s72
      %s87 = sphi 0, %s73
      %s91 = sphi 0, %s91
      %s93 = sphi 0, %s91
      %s94 = sphi 0, %s93
      %s108 = sphi 0, %s94
      %s112 = sphi 0, %s112
      %s114 = sphi 0, %s112
      %s115 = sphi 0, %s114
      %s129 = sphi 0, %s115
      %s133 = sphi 0, %s133
      %s135 = sphi 0, %s133
      %s136 = sphi 0, %s135
      %s150 = sphi 0, %s136
      %s156 = sphi 0, %s158
      %s159 = sphi 0, %s156
      %s160 = sphi 0, %s159
      %s176 = sphi 0, %s160
    $region4: #{tpu_custom_call.1} parent=1 // loop_header_branch
      %18 = sbr.rel (%p16) target = $region8
    $region5: #{tpu_custom_call.1} parent=1 // loop_body
      %s20 = ssub.s32 %s15, 1
      %s21 = ssub.s32 %s15, 2
      %s22 = sadd.s32 %s15, 1
      %s23 = ssub.s32 %s15, %s22
      %p24 = scmp.eq.s32.totalorder %s23, 0
      %s26 = sadd.s32 %s25, 1
      %s27 = scalar_select %p24, %s25, %s26
      %p30 = pneg %p24
      %p31 = scmp.eq.s32.totalorder %s15, 1
      %p32 = por %p30, %p31
      %p33 = scmp.ne.s32.totalorder %s25, %s28
      %p34 = scmp.eq.s32.totalorder %s15, 0
      %p35 = por %p33, %p34
      %p36 = scmp.ne.s32.totalorder %s25, %s28
      %p37 = scmp.eq.s32.totalorder %s20, 1
      %p38 = por %p36, %p37
      %p39 = scmp.ne.s32.totalorder %s28, %s29
      %p40 = scmp.eq.s32.totalorder %s20, 0
      %p41 = por %p39, %p40
      %p42 = scmp.ne.s32.totalorder %s28, %s29
      %p43 = scmp.eq.s32.totalorder %s21, 1
      %p44 = por %p42, %p43
      %p46 = scmp.ne.s32.totalorder %s29, %s45
      %p47 = scmp.eq.s32.totalorder %s21, 0
      %p48 = por %p46, %p47
      %s50 = sadd.s32 %s49, 1
      %p53 = scmp.eq.s32.totalorder %s15, 1
      %p54 = scmp.ne.s32.totalorder %s49, %s51
      %p55 = scmp.eq.s32.totalorder %s15, 0
      %p56 = por %p54, %p55
      %p57 = scmp.ne.s32.totalorder %s49, %s51
      %p58 = scmp.eq.s32.totalorder %s20, 1
      %p59 = por %p57, %p58
      %p60 = scmp.ne.s32.totalorder %s51, %s52
      %p61 = scmp.eq.s32.totalorder %s20, 0
      %p62 = por %p60, %p61
      %p63 = scmp.ne.s32.totalorder %s51, %s52
      %p64 = scmp.eq.s32.totalorder %s21, 1
      %p65 = por %p63, %p64
      %p67 = scmp.ne.s32.totalorder %s52, %s66
      %p68 = scmp.eq.s32.totalorder %s21, 0
      %p69 = por %p67, %p68
      %s71 = sadd.s32 %s70, 1
      %p74 = scmp.eq.s32.totalorder %s15, 1
      %p75 = scmp.ne.s32.totalorder %s70, %s72
      %p76 = scmp.eq.s32.totalorder %s15, 0
      %p77 = por %p75, %p76
      %p78 = scmp.ne.s32.totalorder %s70, %s72
      %p79 = scmp.eq.s32.totalorder %s20, 1
      %p80 = por %p78, %p79
      %p81 = scmp.ne.s32.totalorder %s72, %s73
      %p82 = scmp.eq.s32.totalorder %s20, 0
      %p83 = por %p81, %p82
      %p84 = scmp.ne.s32.totalorder %s72, %s73
      %p85 = scmp.eq.s32.totalorder %s21, 1
      %p86 = por %p84, %p85
      %p88 = scmp.ne.s32.totalorder %s73, %s87
      %p89 = scmp.eq.s32.totalorder %s21, 0
      %p90 = por %p88, %p89
      %s92 = sadd.s32 %s91, 1
      %p95 = scmp.eq.s32.totalorder %s15, 1
      %p96 = scmp.ne.s32.totalorder %s91, %s93
      %p97 = scmp.eq.s32.totalorder %s15, 0
      %p98 = por %p96, %p97
      %p99 = scmp.ne.s32.totalorder %s91, %s93
      %p100 = scmp.eq.s32.totalorder %s20, 1
      %p101 = por %p99, %p100
      %p102 = scmp.ne.s32.totalorder %s93, %s94
      %p103 = scmp.eq.s32.totalorder %s20, 0
      %p104 = por %p102, %p103
      %p105 = scmp.ne.s32.totalorder %s93, %s94
      %p106 = scmp.eq.s32.totalorder %s21, 1
      %p107 = por %p105, %p106
      %p109 = scmp.ne.s32.totalorder %s94, %s108
      %p110 = scmp.eq.s32.totalorder %s21, 0
      %p111 = por %p109, %p110
      %s113 = sadd.s32 %s112, 1
      %p116 = scmp.eq.s32.totalorder %s15, 1
      %p117 = scmp.ne.s32.totalorder %s112, %s114
      %p118 = scmp.eq.s32.totalorder %s15, 0
      %p119 = por %p117, %p118
      %p120 = scmp.ne.s32.totalorder %s112, %s114
      %p121 = scmp.eq.s32.totalorder %s20, 1
      %p122 = por %p120, %p121
      %p123 = scmp.ne.s32.totalorder %s114, %s115
      %p124 = scmp.eq.s32.totalorder %s20, 0
      %p125 = por %p123, %p124
      %p126 = scmp.ne.s32.totalorder %s114, %s115
      %p127 = scmp.eq.s32.totalorder %s21, 1
      %p128 = por %p126, %p127
      %p130 = scmp.ne.s32.totalorder %s115, %s129
      %p131 = scmp.eq.s32.totalorder %s21, 0
      %p132 = por %p130, %p131
      %s134 = sadd.s32 %s133, 1
      %p137 = scmp.eq.s32.totalorder %s15, 1
      %p138 = scmp.ne.s32.totalorder %s133, %s135
      %p139 = scmp.eq.s32.totalorder %s15, 0
      %p140 = por %p138, %p139
      %p141 = scmp.ne.s32.totalorder %s133, %s135
      %p142 = scmp.eq.s32.totalorder %s20, 1
      %p143 = por %p141, %p142
      %p144 = scmp.ne.s32.totalorder %s135, %s136
      %p145 = scmp.eq.s32.totalorder %s20, 0
      %p146 = por %p144, %p145
      %p147 = scmp.ne.s32.totalorder %s135, %s136
      %p148 = scmp.eq.s32.totalorder %s21, 1
      %p149 = por %p147, %p148
      %p151 = scmp.ne.s32.totalorder %s136, %s150
      %p152 = scmp.eq.s32.totalorder %s21, 0
      %p153 = por %p151, %p152
      %s154 = ssub.s32 %s15, %s22
      %p155 = scmp.eq.s32.totalorder %s154, 0
      %s157 = sadd.s32 %s156, 1
      %s158 = scalar_select %p155, %s156, %s157
      %p161 = pneg %p155
      %p162 = scmp.eq.s32.totalorder %s15, 1
      %p163 = por %p161, %p162
      %p164 = scmp.ne.s32.totalorder %s156, %s159
      %p165 = scmp.eq.s32.totalorder %s15, 0
      %p166 = por %p164, %p165
      %p167 = scmp.ne.s32.totalorder %s156, %s159
      %p168 = scmp.eq.s32.totalorder %s20, 1
      %p169 = por %p167, %p168
      %p170 = scmp.ne.s32.totalorder %s159, %s160
      %p171 = scmp.eq.s32.totalorder %s20, 0
      %p172 = por %p170, %p171
      %p173 = scmp.ne.s32.totalorder %s159, %s160
      %p174 = scmp.eq.s32.totalorder %s21, 1
      %p175 = por %p173, %p174
      %p177 = scmp.ne.s32.totalorder %s160, %s176
      %p178 = scmp.eq.s32.totalorder %s21, 0
      %p179 = por %p177, %p178
      %p180 = scmp.le.s32.totalorder 1, %s15
      %p181 = scmp.lt.s32.totalorder %s15, 3
      %p182 = pnand %p180, %p181
      %p183 = pneg %p182
      // Predicated region
      $region9: #{tpu_custom_call.1} parent=5 // pred_check
        _
      $region10: #{tpu_custom_call.1} parent=5 // pred_check_branch
        %185 = sbr.rel (%p182) target = $region12
      $region11: #{tpu_custom_call.1} parent=5 // pred_region
        %s186 = ssub.s32 %s15, 1
        // Predicated region
        $region13: #{tpu_custom_call.1} parent=11 // pred_check
          %p187 = pneg %p62
        $region14: #{tpu_custom_call.1} parent=11 // pred_check_branch
          %189 = sbr.rel (%p187) target = $region16
        $region15: #{tpu_custom_call.1} parent=11 // pred_region
          _
        $region16: #{tpu_custom_call.1} parent=11 // pred_fallthru
          _
        // Predicated region
        $region17: #{tpu_custom_call.1} parent=11 // pred_check
          %p190 = pneg %p83
        $region18: #{tpu_custom_call.1} parent=11 // pred_check_branch
          %192 = sbr.rel (%p190) target = $region20
        $region19: #{tpu_custom_call.1} parent=11 // pred_region
          _
        $region20: #{tpu_custom_call.1} parent=11 // pred_fallthru
          _
        // Predicated region
        $region21: #{tpu_custom_call.1} parent=11 // pred_check
          %p193 = pneg %p104
        $region22: #{tpu_custom_call.1} parent=11 // pred_check_branch
          %195 = sbr.rel (%p193) target = $region24
        $region23: #{tpu_custom_call.1} parent=11 // pred_region
          _
        $region24: #{tpu_custom_call.1} parent=11 // pred_fallthru
          _
        // Predicated region
        $region25: #{tpu_custom_call.1} parent=11 // pred_check
          %p196 = pneg %p125
        $region26: #{tpu_custom_call.1} parent=11 // pred_check_branch
          %198 = sbr.rel (%p196) target = $region28
        $region27: #{tpu_custom_call.1} parent=11 // pred_region
          _
        $region28: #{tpu_custom_call.1} parent=11 // pred_fallthru
          _
        // Predicated region
        $region29: #{tpu_custom_call.1} parent=11 // pred_check
          %p199 = pneg %p146
        $region30: #{tpu_custom_call.1} parent=11 // pred_check_branch
          %201 = sbr.rel (%p199) target = $region32
        $region31: #{tpu_custom_call.1} parent=11 // pred_region
          _
        $region32: #{tpu_custom_call.1} parent=11 // pred_fallthru
          _
      $region12: #{tpu_custom_call.1} parent=5 // pred_fallthru
        _
      %p202 = scmp.lt.s32.totalorder %s15, 2
      // Predicated region
      $region33: #{tpu_custom_call.1} parent=5 // pred_check
        %p203 = pneg %p202
      $region34: #{tpu_custom_call.1} parent=5 // pred_check_branch
        %205 = sbr.rel (%p203) target = $region36
      $region35: #{tpu_custom_call.1} parent=5 // pred_region
        // Predicated region
        $region37: #{tpu_custom_call.1} parent=35 // pred_check
          %p206 = pneg %p35
        $region38: #{tpu_custom_call.1} parent=35 // pred_check_branch
          %208 = sbr.rel (%p206) target = $region40
        $region39: #{tpu_custom_call.1} parent=35 // pred_region
          %p209 = scmp.lt.s32.totalorder %s15, 1
          %s210 = scalar_select %p209, %s15, 1
          %s211 = smul.addr %s210, 16
          %s212 = smul.addr %s211, 8
          %s213 = scalar_lea.vmem %s0, %s212
        $region40: #{tpu_custom_call.1} parent=35 // pred_fallthru
          _
      $region36: #{tpu_custom_call.1} parent=5 // pred_fallthru
        _
      %p214 = scmp.le.s32.totalorder 1, %s15
      %p215 = scmp.lt.s32.totalorder %s15, 3
      %p216 = pnand %p214, %p215
      %p217 = pneg %p216
      // Predicated region
      $region41: #{tpu_custom_call.1} parent=5 // pred_check
        _
      $region42: #{tpu_custom_call.1} parent=5 // pred_check_branch
        %219 = sbr.rel (%p216) target = $region44
      $region43: #{tpu_custom_call.1} parent=5 // pred_region
        %s220 = ssub.s32 %s15, 1
        %p221 = scmp.lt.s32.totalorder %s20, 1
        %s222 = scalar_select %p221, %s20, 1
        %s223 = smul.addr %s222, 16
        %s224 = smul.addr %s223, 8
        %s225 = scalar_lea.vmem %s0, %s224
        %p226 = pneg %p41
        %p227 = pneg %p38
        %p228 = pneg %p62
        %p229 = pneg %p59
        %p230 = pneg %p83
        %p231 = pneg %p80
        %p232 = pneg %p104
        %p233 = pneg %p101
        %p234 = pneg %p125
        %p235 = pneg %p122
        %p236 = pneg %p146
        %p237 = pneg %p143
        %p238 = pneg %p172
        %p239 = pneg %p169
        %s240 = sand.u32 %s159, 1
        %s241 = scalar_lea.sflag [#allocation3], %s240
        %s242 = sand.u32 %s159, 1
        %s243 = smul.addr %s242, 16
        %s244 = scalar_lea.vmem [#allocation2], %s243
        %p245 = scmp.lt.s32.totalorder %s20, 1
        %s246 = scalar_select %p245, %s20, 1
        %s247 = smul.addr %s246, 16
        %s248 = smul.addr %s247, 8
        %s249 = scalar_lea.vmem %s0, %s248
        %v251 = vld [vmem:[%s249] sm:$0xff]
        %v252 = vld [vmem:[%s249 + $0x8] sm:$0xff]
        %v253 = vld [vmem:[%s249 + $0x10] sm:$0xff]
        %v254 = vld [vmem:[%s249 + $0x18] sm:$0xff]
        %v255 = vld [vmem:[%s249 + $0x20] sm:$0xff]
        %v256 = vld [vmem:[%s249 + $0x28] sm:$0xff]
        %v257 = vld [vmem:[%s249 + $0x30] sm:$0xff]
        %v258 = vld [vmem:[%s249 + $0x38] sm:$0xff]
        %v259 = vld [vmem:[%s249 + $0x40] sm:$0xff]
        %v260 = vld [vmem:[%s249 + $0x48] sm:$0xff]
        %v261 = vld [vmem:[%s249 + $0x50] sm:$0xff]
        %v262 = vld [vmem:[%s249 + $0x58] sm:$0xff]
        %v263 = vld [vmem:[%s249 + $0x60] sm:$0xff]
        %v264 = vld [vmem:[%s249 + $0x68] sm:$0xff]
        %v265 = vld [vmem:[%s249 + $0x70] sm:$0xff]
        %v266 = vld [vmem:[%s249 + $0x78] sm:$0xff]
        %v267 = vld [vmem:[%s1] sm:$0xff]
        %v268 = vld [vmem:[%s2] sm:$0xf]
        %v269 = vld [vmem:[%s3] sm:$0x1]
        %v270 = vld [vmem:[%s4] sm:$0xff]
        %v271 = vld [vmem:[%s4 + $0x8] sm:$0xff]
        %v272 = vld [vmem:[%s5] sm:$0xf]
        %v273 = vld [vmem:[%s5 + $0x4] sm:$0xf]
        %v275 = vcombine.high %v267, %v267
        %v277 = vunpack.c.l.s4 1966171168
        %v278 = vunpack.c.0.s8 %v277
        %v279 = vlaneseq
        %v280 = vshrl.u32 %v279, 7
        %v281 = vsub.s32 %v278, %v280
        %v282 = vrot.slane %v267, %v281
        %v284 = vunpack.c.l.s4 1966171168
        %v285 = vunpack.c.0.s8 %v284
        %v286 = vlaneseq
        %v287 = vshrl.u32 %v286, 7
        %v288 = vsub.s32 %v285, %v287
        %v289 = vrot.slane %v275, %v288
        %v290 = vcombine.high %v282, %v282
        %v291 = vcombine.high %v289, %v289
        %v293 = vunpack.c.l.s4 1966171168
        %v294 = vunpack.c.0.s8 %v293
        %v295 = vlaneseq
        %v296 = vshrl.u32 %v295, 7
        %v297 = vsub.s32 %v294, %v296
        %v298 = vrot.slane %v282, %v297
        %v300 = vunpack.c.l.s4 1966171168
        %v301 = vunpack.c.0.s8 %v300
        %v302 = vlaneseq
        %v303 = vshrl.u32 %v302, 7
        %v304 = vsub.s32 %v301, %v303
        %v305 = vrot.slane %v289, %v304
        %v307 = vunpack.c.l.s4 1966171168
        %v308 = vunpack.c.0.s8 %v307
        %v309 = vlaneseq
        %v310 = vshrl.u32 %v309, 7
        %v311 = vsub.s32 %v308, %v310
        %v312 = vrot.slane %v290, %v311
        %v314 = vunpack.c.l.s4 1966171168
        %v315 = vunpack.c.0.s8 %v314
        %v316 = vlaneseq
        %v317 = vshrl.u32 %v316, 7
        %v318 = vsub.s32 %v315, %v317
        %v319 = vrot.slane %v291, %v318
        %v320 = vcombine.high %v298, %v298
        %v321 = vcombine.high %v305, %v305
        %v322 = vcombine.high %v312, %v312
        %v323 = vcombine.high %v319, %v319
        %v324 = vlaneseq
        %v325 = vshrl.u32 %v324, 7
        %v326 = vsub.s32 0, %v325
        %v327 = vrot.slane %v298, %v326
        %v328 = vlaneseq
        %v329 = vshrl.u32 %v328, 7
        %v330 = vsub.s32 0, %v329
        %v331 = vrot.slane %v312, %v330
        %v332 = vlaneseq
        %v333 = vshrl.u32 %v332, 7
        %v334 = vsub.s32 0, %v333
        %v335 = vrot.slane %v320, %v334
        %v336 = vlaneseq
        %v337 = vshrl.u32 %v336, 7
        %v338 = vsub.s32 0, %v337
        %v339 = vrot.slane %v322, %v338
        %v340 = vlaneseq
        %v341 = vshrl.u32 %v340, 7
        %v342 = vsub.s32 0, %v341
        %v343 = vrot.slane %v305, %v342
        %v344 = vlaneseq
        %v345 = vshrl.u32 %v344, 7
        %v346 = vsub.s32 0, %v345
        %v347 = vrot.slane %v319, %v346
        %v348 = vlaneseq
        %v349 = vshrl.u32 %v348, 7
        %v350 = vsub.s32 0, %v349
        %v351 = vrot.slane %v321, %v350
        %v352 = vlaneseq
        %v353 = vshrl.u32 %v352, 7
        %v354 = vsub.s32 0, %v353
        %v355 = vrot.slane %v323, %v354
        %356 = vset.pattern.permute.xlu0 0
        %357 = vperm.xlu0 %356, %v327
        %v358 = vpop.permute.xlu0 %357
        %360 = vset.pattern.permute.xlu0 0
        %361 = vperm.xlu0 %360, %v331
        %v362 = vpop.permute.xlu0 %361
        %364 = vset.pattern.permute.xlu0 0
        %365 = vperm.xlu0 %364, %v335
        %v366 = vpop.permute.xlu0 %365
        %368 = vset.pattern.permute.xlu0 0
        %369 = vperm.xlu0 %368, %v339
        %v370 = vpop.permute.xlu0 %369
        %372 = vset.pattern.permute.xlu0 0
        %373 = vperm.xlu0 %372, %v343
        %v374 = vpop.permute.xlu0 %373
        %376 = vset.pattern.permute.xlu0 0
        %377 = vperm.xlu0 %376, %v347
        %v378 = vpop.permute.xlu0 %377
        %380 = vset.pattern.permute.xlu0 0
        %381 = vperm.xlu0 %380, %v351
        %v382 = vpop.permute.xlu0 %381
        %384 = vset.pattern.permute.xlu0 0
        %385 = vperm.xlu0 %384, %v355
        %v386 = vpop.permute.xlu0 %385
        %v388 = vmul.f32 %v251, %v358
        %v389 = vmul.f32 %v252, %v358
        %v390 = vmul.f32 %v253, %v362
        %v391 = vmul.f32 %v254, %v362
        %v392 = vmul.f32 %v255, %v366
        %v393 = vmul.f32 %v256, %v366
        %v394 = vmul.f32 %v257, %v370
        %v395 = vmul.f32 %v258, %v370
        %v396 = vmul.f32 %v259, %v374
        %v397 = vmul.f32 %v260, %v374
        %v398 = vmul.f32 %v261, %v378
        %v399 = vmul.f32 %v262, %v378
        %v400 = vmul.f32 %v263, %v382
        %v401 = vmul.f32 %v264, %v382
        %v402 = vmul.f32 %v265, %v386
        %v403 = vmul.f32 %v266, %v386
        %vm404 = vcmask 31744
        %v405 = vsel %vm404, %v388, 0.0
        %v406 = vsel %vm404, %v390, 0.0
        %v407 = vadd.f32 %v405, %v406
        %v408 = vsel %vm404, %v392, 0.0
        %v409 = vadd.f32 %v407, %v408
        %v410 = vsel %vm404, %v394, 0.0
        %v411 = vadd.f32 %v409, %v410
        %v412 = vsel %vm404, %v396, 0.0
        %v413 = vadd.f32 %v411, %v412
        %v414 = vsel %vm404, %v398, 0.0
        %v415 = vadd.f32 %v413, %v414
        %v416 = vsel %vm404, %v400, 0.0
        %v417 = vadd.f32 %v415, %v416
        %v418 = vsel %vm404, %v402, 0.0
        %v419 = vadd.f32 %v417, %v418
        %v420 = vsel %vm404, %v389, 0.0
        %v421 = vsel %vm404, %v391, 0.0
        %v422 = vadd.f32 %v420, %v421
        %v423 = vsel %vm404, %v393, 0.0
        %v424 = vadd.f32 %v422, %v423
        %v425 = vsel %vm404, %v395, 0.0
        %v426 = vadd.f32 %v424, %v425
        %v427 = vsel %vm404, %v397, 0.0
        %v428 = vadd.f32 %v426, %v427
        %v429 = vsel %vm404, %v399, 0.0
        %v430 = vadd.f32 %v428, %v429
        %v431 = vsel %vm404, %v401, 0.0
        %v432 = vadd.f32 %v430, %v431
        %v433 = vsel %vm404, %v403, 0.0
        %v434 = vadd.f32 %v432, %v433
        %v436 = vsel %vm404, %v419, 0
        %v439 = vsel %vm404, %v434, 0
        %vm441 = vcmask 1043456
        %v443 = vsel %vm441, %v268, 0
        %445 = vmatprep.subr.mxu0 0.0
        %446 = vmatpush1.msra.mxu0 %v443
        %447 = vmatprep.subr.mxu0 0.0
        %448 = vmatpush1.msra.mxu0 0.0
        %449 = vmatprep.subr.mxu0 0.0
        %450 = vmatpush1.msra.mxu0 0.0
        %451 = vmatprep.subr.mxu0 0.0
        %452 = vmatpush1.msra.mxu0 0.0
        %453 = vmatprep.subr.mxu0 0.0
        %454 = vmatpush1.msra.mxu0 0.0
        %455 = vmatprep.subr.mxu0 0.0
        %456 = vmatpush1.msra.mxu0 0.0
        %457 = vmatprep.subr.mxu0 0.0
        %458 = vmatpush1.msra.mxu0 0.0
        %459 = vmatprep.subr.mxu0 0.0
        %460 = vmatpush1.msra.mxu0 0.0
        %461 = vmatprep.subr.mxu0 0.0
        %462 = vmatpush1.msra.mxu0 0.0
        %463 = vmatprep.subr.mxu0 0.0
        %464 = vmatpush1.msra.mxu0 0.0
        %465 = vmatprep.subr.mxu0 0.0
        %466 = vmatpush1.msra.mxu0 0.0
        %467 = vmatprep.subr.mxu0 0.0
        %468 = vmatpush1.msra.mxu0 0.0
        %469 = vmatprep.subr.mxu0 0.0
        %470 = vmatpush1.msra.mxu0 0.0
        %471 = vmatprep.subr.mxu0 0.0
        %472 = vmatpush1.msra.mxu0 0.0
        %473 = vmatprep.subr.mxu0 0.0
        %474 = vmatpush1.msra.mxu0 0.0
        %475 = vmatprep.subr.mxu0 0.0
        %476 = vmatpush1.msra.mxu0 0.0
        %477 = vmatprep.subr.mxu0 0.0
        %478 = vmatpush1.msra.mxu0 0.0
        %479 = vmatprep.subr.mxu0 0.0
        %480 = vmatpush1.msra.mxu0 0.0
        %481 = vmatprep.subr.mxu0 0.0
        %482 = vmatpush1.msra.mxu0 0.0
        %483 = vmatprep.subr.mxu0 0.0
        %484 = vmatpush1.msra.mxu0 0.0
        %485 = vmatprep.subr.mxu0 0.0
        %486 = vmatpush1.msra.mxu0 0.0
        %487 = vmatprep.subr.mxu0 0.0
        %488 = vmatpush1.msra.mxu0 0.0
        %489 = vmatprep.subr.mxu0 0.0
        %490 = vmatpush1.msra.mxu0 0.0
        %491 = vmatprep.subr.mxu0 0.0
        %492 = vmatpush1.msra.mxu0 0.0
        %493 = vmatprep.subr.mxu0 0.0
        %494 = vmatpush1.msra.mxu0 0.0
        %495 = vmatprep.subr.mxu0 0.0
        %496 = vmatpush1.msra.mxu0 0.0
        %497 = vmatprep.subr.mxu0 0.0
        %498 = vmatpush1.msra.mxu0 0.0
        %499 = vmatprep.subr.mxu0 0.0
        %500 = vmatpush1.msra.mxu0 0.0
        %501 = vmatprep.subr.mxu0 0.0
        %502 = vmatpush1.msra.mxu0 0.0
        %503 = vmatprep.subr.mxu0 0.0
        %504 = vmatpush1.msra.mxu0 0.0
        %505 = vmatprep.subr.mxu0 0.0
        %506 = vmatpush1.msra.mxu0 0.0
        %507 = vmatprep.subr.mxu0 0.0
        %508 = vmatpush1.msra.mxu0 0.0
        %509 = vmatprep.mubr.f32.mxu0 0.0
        %510 = vmatmul.mubr.f32.gmra.mrb[0].mxu0 %v436
        %v511 = vpop.f32.mrb[0].mxu0
        %v512 = vadd.f32 0.0, %v511
        %v513 = vpop.f32.mrb[0].mxu0
        %514 = vmatprep.mubr.f32.mxu0 0.0
        %515 = vmatmul.mubr.f32.gmra.mrb[0].mxu0 %v439
        %v516 = vpop.f32.mrb[0].mxu0
        %v517 = vadd.f32 0.0, %v516
        %v518 = vpop.f32.mrb[0].mxu0
        %519 = vdwg.mxu0
        %v521 = vlaneseq
        %v522 = vshrl.u32 %v521, 7
        %v523 = vsub.s32 0, %v522
        %v524 = vrot.slane %v269, %v523
        %v526 = vmul.f32 %v251, %v524
        %v527 = vmul.f32 %v252, %v524
        %v528 = vmul.f32 %v253, %v524
        %v529 = vmul.f32 %v254, %v524
        %v530 = vmul.f32 %v255, %v524
        %v531 = vmul.f32 %v256, %v524
        %v532 = vmul.f32 %v257, %v524
        %v533 = vmul.f32 %v258, %v524
        %v534 = vmul.f32 %v259, %v524
        %v535 = vmul.f32 %v260, %v524
        %v536 = vmul.f32 %v261, %v524
        %v537 = vmul.f32 %v262, %v524
        %v538 = vmul.f32 %v263, %v524
        %v539 = vmul.f32 %v264, %v524
        %v540 = vmul.f32 %v265, %v524
        %v541 = vmul.f32 %v266, %v524
        %v542 = vsel %vm404, %v526, 0.0
        %543 = vadd.xlane.f32.xlu0 %v542
        %v544 = vpop.xlane.xlu0 %543
        %v545 = vsel %vm404, %v527, 0.0
        %546 = vadd.xlane.f32.xlu0 %v545
        %v547 = vpop.xlane.xlu0 %546
        %v548 = vsel %vm404, %v528, 0.0
        %549 = vadd.xlane.f32.xlu0 %v548
        %v550 = vpop.xlane.xlu0 %549
        %v551 = vsel %vm404, %v529, 0.0
        %552 = vadd.xlane.f32.xlu0 %v551
        %v553 = vpop.xlane.xlu0 %552
        %v554 = vsel %vm404, %v530, 0.0
        %555 = vadd.xlane.f32.xlu0 %v554
        %v556 = vpop.xlane.xlu0 %555
        %v557 = vsel %vm404, %v531, 0.0
        %558 = vadd.xlane.f32.xlu0 %v557
        %v559 = vpop.xlane.xlu0 %558
        %v560 = vsel %vm404, %v532, 0.0
        %561 = vadd.xlane.f32.xlu0 %v560
        %v562 = vpop.xlane.xlu0 %561
        %v563 = vsel %vm404, %v533, 0.0
        %564 = vadd.xlane.f32.xlu0 %v563
        %v565 = vpop.xlane.xlu0 %564
        %v566 = vsel %vm404, %v534, 0.0
        %567 = vadd.xlane.f32.xlu0 %v566
        %v568 = vpop.xlane.xlu0 %567
        %v569 = vsel %vm404, %v535, 0.0
        %570 = vadd.xlane.f32.xlu0 %v569
        %v571 = vpop.xlane.xlu0 %570
        %v572 = vsel %vm404, %v536, 0.0
        %573 = vadd.xlane.f32.xlu0 %v572
        %v574 = vpop.xlane.xlu0 %573
        %v575 = vsel %vm404, %v537, 0.0
        %576 = vadd.xlane.f32.xlu0 %v575
        %v577 = vpop.xlane.xlu0 %576
        %v578 = vsel %vm404, %v538, 0.0
        %579 = vadd.xlane.f32.xlu0 %v578
        %v580 = vpop.xlane.xlu0 %579
        %v581 = vsel %vm404, %v539, 0.0
        %582 = vadd.xlane.f32.xlu0 %v581
        %v583 = vpop.xlane.xlu0 %582
        %v584 = vsel %vm404, %v540, 0.0
        %585 = vadd.xlane.f32.xlu0 %v584
        %v586 = vpop.xlane.xlu0 %585
        %v587 = vsel %vm404, %v541, 0.0
        %588 = vadd.xlane.f32.xlu0 %v587
        %v589 = vpop.xlane.xlu0 %588
        %v606 = vlaneseq
        %v607 = vand.u32 %v606, 127
        %v608 = vlaneseq
        %v609 = vshrl.u32 %v608, 7
        %v610 = vsub.s32 %v607, %v609
        %v611 = vrot.slane %v544, %v610
        %v612 = vadd.s32 %v607, 4294967288
        %v613 = vlaneseq
        %v614 = vshrl.u32 %v613, 7
        %v615 = vsub.s32 %v612, %v614
        %v616 = vrot.slane %v547, %v615
        %vm617 = vcmask 130112
        %v618 = vsel %vm617, %v616, %v611
        %v619 = vlaneseq
        %v620 = vshrl.u32 %v619, 7
        %v621 = vsub.s32 %v607, %v620
        %v622 = vrot.slane %v550, %v621
        %v623 = vlaneseq
        %v624 = vshrl.u32 %v623, 7
        %v625 = vsub.s32 %v612, %v624
        %v626 = vrot.slane %v553, %v625
        %v627 = vsel %vm617, %v626, %v622
        %v628 = vlaneseq
        %v629 = vshrl.u32 %v628, 7
        %v630 = vsub.s32 %v607, %v629
        %v631 = vrot.slane %v556, %v630
        %v632 = vlaneseq
        %v633 = vshrl.u32 %v632, 7
        %v634 = vsub.s32 %v612, %v633
        %v635 = vrot.slane %v559, %v634
        %v636 = vsel %vm617, %v635, %v631
        %v637 = vlaneseq
        %v638 = vshrl.u32 %v637, 7
        %v639 = vsub.s32 %v607, %v638
        %v640 = vrot.slane %v562, %v639
        %v641 = vlaneseq
        %v642 = vshrl.u32 %v641, 7
        %v643 = vsub.s32 %v612, %v642
        %v644 = vrot.slane %v565, %v643
        %v645 = vsel %vm617, %v644, %v640
        %v646 = vlaneseq
        %v647 = vshrl.u32 %v646, 7
        %v648 = vsub.s32 %v607, %v647
        %v649 = vrot.slane %v568, %v648
        %v650 = vlaneseq
        %v651 = vshrl.u32 %v650, 7
        %v652 = vsub.s32 %v612, %v651
        %v653 = vrot.slane %v571, %v652
        %v654 = vsel %vm617, %v653, %v649
        %v655 = vlaneseq
        %v656 = vshrl.u32 %v655, 7
        %v657 = vsub.s32 %v607, %v656
        %v658 = vrot.slane %v574, %v657
        %v659 = vlaneseq
        %v660 = vshrl.u32 %v659, 7
        %v661 = vsub.s32 %v612, %v660
        %v662 = vrot.slane %v577, %v661
        %v663 = vsel %vm617, %v662, %v658
        %v664 = vlaneseq
        %v665 = vshrl.u32 %v664, 7
        %v666 = vsub.s32 %v607, %v665
        %v667 = vrot.slane %v580, %v666
        %v668 = vlaneseq
        %v669 = vshrl.u32 %v668, 7
        %v670 = vsub.s32 %v612, %v669
        %v671 = vrot.slane %v583, %v670
        %v672 = vsel %vm617, %v671, %v667
        %v673 = vlaneseq
        %v674 = vshrl.u32 %v673, 7
        %v675 = vsub.s32 %v607, %v674
        %v676 = vrot.slane %v586, %v675
        %v677 = vlaneseq
        %v678 = vshrl.u32 %v677, 7
        %v679 = vsub.s32 %v612, %v678
        %v680 = vrot.slane %v589, %v679
        %v681 = vsel %vm617, %v680, %v676
        %vm682 = vcmask 1041409
        %v683 = vsel %vm682, %v627, %v618
        %vm684 = vcmask 1042434
        %v685 = vsel %vm684, %v636, %v683
        %vm686 = vcmask 1043459
        %v687 = vsel %vm686, %v645, %v685
        %vm688 = vcmask 1044484
        %v689 = vsel %vm688, %v654, %v687
        %vm690 = vcmask 1045509
        %v691 = vsel %vm690, %v663, %v689
        %vm692 = vcmask 1046534
        %v693 = vsel %vm692, %v672, %v691
        %vm694 = vcmask 1047559
        %v695 = vsel %vm694, %v681, %v693
        %vm697 = vcmask 64512
        %v699 = vsel %vm697, %v512, 0
        %v702 = vsel %vm697, %v517, 0
        %704 = vmatprep.subr.mxu0 0.0
        %705 = vmatpush1.msra.mxu0 %v695
        %706 = vmatprep.subr.mxu0 0.0
        %707 = vmatpush1.msra.mxu0 0.0
        %708 = vmatprep.subr.mxu0 0.0
        %709 = vmatpush1.msra.mxu0 0.0
        %710 = vmatprep.subr.mxu0 0.0
        %711 = vmatpush1.msra.mxu0 0.0
        %712 = vmatprep.subr.mxu0 0.0
        %713 = vmatpush1.msra.mxu0 0.0
        %714 = vmatprep.subr.mxu0 0.0
        %715 = vmatpush1.msra.mxu0 0.0
        %716 = vmatprep.subr.mxu0 0.0
        %717 = vmatpush1.msra.mxu0 0.0
        %718 = vmatprep.subr.mxu0 0.0
        %719 = vmatpush1.msra.mxu0 0.0
        %720 = vmatprep.subr.mxu0 0.0
        %721 = vmatpush1.msra.mxu0 0.0
        %722 = vmatprep.subr.mxu0 0.0
        %723 = vmatpush1.msra.mxu0 0.0
        %724 = vmatprep.subr.mxu0 0.0
        %725 = vmatpush1.msra.mxu0 0.0
        %726 = vmatprep.subr.mxu0 0.0
        %727 = vmatpush1.msra.mxu0 0.0
        %728 = vmatprep.subr.mxu0 0.0
        %729 = vmatpush1.msra.mxu0 0.0
        %730 = vmatprep.subr.mxu0 0.0
        %731 = vmatpush1.msra.mxu0 0.0
        %732 = vmatprep.subr.mxu0 0.0
        %733 = vmatpush1.msra.mxu0 0.0
        %734 = vmatprep.subr.mxu0 0.0
        %735 = vmatpush1.msra.mxu0 0.0
        %736 = vmatprep.subr.mxu0 0.0
        %737 = vmatpush1.msra.mxu0 0.0
        %738 = vmatprep.subr.mxu0 0.0
        %739 = vmatpush1.msra.mxu0 0.0
        %740 = vmatprep.subr.mxu0 0.0
        %741 = vmatpush1.msra.mxu0 0.0
        %742 = vmatprep.subr.mxu0 0.0
        %743 = vmatpush1.msra.mxu0 0.0
        %744 = vmatprep.subr.mxu0 0.0
        %745 = vmatpush1.msra.mxu0 0.0
        %746 = vmatprep.subr.mxu0 0.0
        %747 = vmatpush1.msra.mxu0 0.0
        %748 = vmatprep.subr.mxu0 0.0
        %749 = vmatpush1.msra.mxu0 0.0
        %750 = vmatprep.subr.mxu0 0.0
        %751 = vmatpush1.msra.mxu0 0.0
        %752 = vmatprep.subr.mxu0 0.0
        %753 = vmatpush1.msra.mxu0 0.0
        %754 = vmatprep.subr.mxu0 0.0
        %755 = vmatpush1.msra.mxu0 0.0
        %756 = vmatprep.subr.mxu0 0.0
        %757 = vmatpush1.msra.mxu0 0.0
        %758 = vmatprep.subr.mxu0 0.0
        %759 = vmatpush1.msra.mxu0 0.0
        %760 = vmatprep.subr.mxu0 0.0
        %761 = vmatpush1.msra.mxu0 0.0
        %762 = vmatprep.subr.mxu0 0.0
        %763 = vmatpush1.msra.mxu0 0.0
        %764 = vmatprep.subr.mxu0 0.0
        %765 = vmatpush1.msra.mxu0 0.0
        %766 = vmatprep.subr.mxu0 0.0
        %767 = vmatpush1.msra.mxu0 0.0
        %768 = vmatprep.mubr.f32.mxu0 0.0
        %769 = vmatmul.mubr.f32.gmra.mrb[0].mxu0 %v699
        %v770 = vpop.f32.mrb[0].mxu0
        %v771 = vadd.f32 %v270, %v770
        %v772 = vpop.f32.mrb[0].mxu0
        %773 = vmatprep.mubr.f32.mxu0 0.0
        %774 = vmatmul.mubr.f32.gmra.mrb[0].mxu0 %v702
        %v775 = vpop.f32.mrb[0].mxu0
        %v776 = vadd.f32 %v271, %v775
        %v777 = vpop.f32.mrb[0].mxu0
        %778 = vdwg.mxu0
        %v779 = vxor.u32 %v771, 2147483648
        %v780 = vxor.u32 %v776, 2147483648
        %v781 = vmul.f32 %v779, 1.442695
        %v782 = vpow.pop %v781
        %v783 = vmul.f32 %v780, 1.442695
        %v784 = vpow.pop %v783
        %v785 = vadd.f32 %v782, 1.0
        %v786 = vadd.f32 %v784, 1.0
        %v787 = vrcp.pop %v785
        %v788 = vmul.f32 1.0, %v787
        %v789 = vrcp.pop %v786
        %v790 = vmul.f32 1.0, %v789
        %v791 = vpack.c.bf16 %v790, %v788
        %v794 = vunpack.c.l.b16 %v272
        %v795 = vunpack.c.l.b16 %v273
        %v796 = vpack.c.b16 %v795, %v794
        %vm798 = vcmask 130048
        %v800 = vsel %vm798, %v791, 0
        %802 = vmatprep.subr.bf16.mxu0 0
        %803 = vmatpush1.bf16.msra.mxu0 %v796
        %804 = vmatprep.subr.bf16.mxu0 0
        %805 = vmatpush1.bf16.msra.mxu0 0
        %806 = vmatprep.subr.bf16.mxu0 0
        %807 = vmatpush1.bf16.msra.mxu0 0
        %808 = vmatprep.subr.bf16.mxu0 0
        %809 = vmatpush1.bf16.msra.mxu0 0
        %810 = vmatprep.subr.bf16.mxu0 0
        %811 = vmatpush1.bf16.msra.mxu0 0
        %812 = vmatprep.subr.bf16.mxu0 0
        %813 = vmatpush1.bf16.msra.mxu0 0
        %814 = vmatprep.subr.bf16.mxu0 0
        %815 = vmatpush1.bf16.msra.mxu0 0
        %816 = vmatprep.subr.bf16.mxu0 0
        %817 = vmatpush1.bf16.msra.mxu0 0
        %818 = vmatprep.subr.bf16.mxu0 0
        %819 = vmatpush1.bf16.msra.mxu0 0
        %820 = vmatprep.subr.bf16.mxu0 0
        %821 = vmatpush1.bf16.msra.mxu0 0
        %822 = vmatprep.subr.bf16.mxu0 0
        %823 = vmatpush1.bf16.msra.mxu0 0
        %824 = vmatprep.subr.bf16.mxu0 0
        %825 = vmatpush1.bf16.msra.mxu0 0
        %826 = vmatprep.subr.bf16.mxu0 0
        %827 = vmatpush1.bf16.msra.mxu0 0
        %828 = vmatprep.subr.bf16.mxu0 0
        %829 = vmatpush1.bf16.msra.mxu0 0
        %830 = vmatprep.subr.bf16.mxu0 0
        %831 = vmatpush1.bf16.msra.mxu0 0
        %832 = vmatprep.subr.bf16.mxu0 0
        %833 = vmatpush1.bf16.msra.mxu0 0
        %834 = vmatprep.mubr.bf16.mxu0 0
        %835 = vmatmul.mubr.bf16.gmra.mrb[0].mxu0 %v800
        %v836 = vpop.f32.mrb[0].mxu0
        %v837 = vadd.f32 0.0, %v836
        %v838 = vpop.f32.mrb[0].mxu0
        %v839 = vpop.f32.mrb[0].mxu0
        %v840 = vadd.f32 0.0, %v839
        %v841 = vpop.f32.mrb[0].mxu0
        %842 = vdwg.mxu0
        %v843 = vsel %vm798, %v837, -inf
        %v844 = vsel %vm798, %v840, -inf
        %v845 = vmax.f32 %v843, %v844
        %v846 = vrot.slane %v845, 4
        %v847 = vmax.f32 %v845, %v846
        %v848 = vrot.slane %v847, 2
        %v849 = vmax.f32 %v847, %v848
        %v850 = vrot.slane %v849, 1
        %v851 = vmax.f32 %v849, %v850
        %v852 = vsub.f32 %v837, %v851
        %v853 = vsub.f32 %v840, %v851
        %v854 = vmul.f32 %v852, 1.442695
        %v855 = vpow.pop %v854
        %v856 = vmul.f32 %v853, 1.442695
        %v857 = vpow.pop %v856
        %v858 = vsel %vm798, %v855, 0.0
        %v859 = vsel %vm798, %v857, 0.0
        %v860 = vadd.f32 %v858, %v859
        %v861 = vrot.slane %v860, 4
        %v862 = vadd.f32 %v860, %v861
        %v863 = vrot.slane %v862, 2
        %v864 = vadd.f32 %v862, %v863
        %v865 = vrot.slane %v864, 1
        %v866 = vadd.f32 %v864, %v865
        %v867 = vrcp.pop %v866
        %v868 = vmul.f32 %v866, %v867
        %v869 = vsub.f32 2.0, %v868
        %v870 = vmul.f32 %v867, %v869
        %v871 = vmul.f32 %v855, %v870
        %v872 = vmul.f32 %v857, %v870
        %873 = vst.msk [vmem:[%s244] sm:$0xff] %vm798, %v871
        %874 = vst.msk [vmem:[%s244 + $0x8] sm:$0xff] %vm798, %v872
        %s875 = sand.u32 %s159, 1
        %s876 = scalar_lea.sflag [#allocation3], %s875
        %s877 = sand.u32 %s159, 1
        %s878 = smul.addr %s877, 16
        %s879 = scalar_lea.vmem [#allocation2], %s878
        // Predicated region
        $region45: #{tpu_custom_call.1} parent=43 // pred_check
          %p880 = pneg %p169
        $region46: #{tpu_custom_call.1} parent=43 // pred_check_branch
          %882 = sbr.rel (%p880) target = $region48
        $region47: #{tpu_custom_call.1} parent=43 // pred_region
          %s884 = ssub.s32 256, 256
          %885 = vsyncadd %s876, %s884
          %s886 = smul.addr %s20, 2
          %s887 = smul.addr %s886, 128
          %s888 = scalar_lea.hbm %s6, %s887
          %s889 = sshll.u32 %s879, 4
          %s890 = int_to_ptr.vmem [resolvable:$true] %s889
          %895 = dma.vmem_to_hbm [thread:$0]  %s890, 256, %s888, %s876, 128, 128, 8
        $region48: #{tpu_custom_call.1} parent=43 // pred_fallthru
          _
      $region44: #{tpu_custom_call.1} parent=5 // pred_fallthru
        _
      %p896 = scmp.le.s32.totalorder 2, %s15
      // Predicated region
      $region49: #{tpu_custom_call.1} parent=5 // pred_check
        %p897 = pneg %p896
      $region50: #{tpu_custom_call.1} parent=5 // pred_check_branch
        %899 = sbr.rel (%p897) target = $region52
      $region51: #{tpu_custom_call.1} parent=5 // pred_region
        %s900 = ssub.s32 %s15, 2
        // Predicated region
        $region53: #{tpu_custom_call.1} parent=51 // pred_check
          %p901 = pneg %p175
        $region54: #{tpu_custom_call.1} parent=51 // pred_check_branch
          %903 = sbr.rel (%p901) target = $region56
        $region55: #{tpu_custom_call.1} parent=51 // pred_region
          %s904 = sand.u32 %s160, 1
          %s905 = scalar_lea.sflag [#allocation3], %s904
          %s906 = sand.u32 %s160, 1
          %s907 = smul.addr %s906, 16
          %s908 = scalar_lea.vmem [#allocation2], %s907
          %909 = dma.done %s905, 256
        $region56: #{tpu_custom_call.1} parent=51 // pred_fallthru
          _
      $region52: #{tpu_custom_call.1} parent=5 // pred_fallthru
        _
    $region6: #{tpu_custom_call.1} parent=1 // loop_footer
      %s19 = sadd.s32 1, %s15
    $region7: #{tpu_custom_call.1} parent=1 // loop_footer_branch
      %14 = sbr.rel target = $region3
    $region8: #{tpu_custom_call.1} parent=1 // loop_exit
      _
    %910 = vsyncpa [#allocation3], 1
    %s911 = scalar_lea.sflag [#allocation3], 1
    %912 = vsyncpa %s911, 1

</llo_original>
